<compile_context>
chip_gen: v7x
topology: tpu7x:2x2x1
jax: 0.10.0
libtpu: 0.0.40
codegen_flags: <defaults>
</compile_context>

<pallas_src>
import functools

import jax
import jax.numpy as jnp
from jax import lax
from jax.experimental import pallas as pl
from jax.experimental.pallas import tpu as pltpu


def _round_up(x: int, m: int) -> int:
    return (x + m - 1) // m * m


def _device_kind() -> str:
    try:
        return jax.devices()[0].device_kind.lower()
    except Exception:
        return ""


def _is_pre_v6(kind: str) -> bool:
    # v5e/v5p and older have no bf16 VALU -> build counts in int32 there.
    return any(t in kind for t in ("v2", "v3", "v4", "v5"))


def _is_multi_core(kind: str) -> bool:
    # v7x has 2 TensorCores per chip.
    return ("v7" in kind) or ("7x" in kind)


def _vmem_capacity_bytes() -> int:
    try:
        cap = int(pltpu.get_tpu_info().vmem_capacity_bytes)
        if cap > 0:
            return cap
    except Exception:
        pass
    kind = _device_kind()
    return 64 * 1024 * 1024 if _is_multi_core(kind) else 128 * 1024 * 1024


def _vocab_plan(V: int, H: int):
    """Vocab-chunk width, padded vocab and padded hidden for a (V, H) table."""
    kind = _device_kind()
    tv_pref = 128 if _is_pre_v6(kind) else 256   # match MXU K depth
    V128 = _round_up(max(V, 1), 128)
    TV = min(tv_pref, V128)
    V_pad = _round_up(V128, TV)
    H_pad = _round_up(H, 128)
    return TV, V_pad, H_pad


def _pad_table(weight: jax.Array, dtype) -> jax.Array:
    """Quantize + zero-pad a table once (host side, at construction time)."""
    V, H = weight.shape
    _, V_pad, H_pad = _vocab_plan(V, H)
    w = weight.astype(dtype)
    if (V_pad, H_pad) != (V, H):
        w = jnp.pad(w, ((0, V_pad - V), (0, H_pad - H)))
    return w


def _embedding_bag_sum_kernel(idx_ref, w_ref, out_ref, acc_ref, *,
                              bag_size: int, count_dtype, multi_chunk: bool):
    """out[b, :] += sum_s one_hot(idx[b, s])[vocab chunk j] @ W_chunk_j.

    idx_ref: (TB, S) int32   -- one tile of bags (resident across vocab chunks)
    w_ref:   (TV, H_pad)     -- one vocab chunk of the (padded) table
    out_ref: (TB, H_pad)
    acc_ref: (TB, H_pad) f32 -- scratch accumulator (used when multi_chunk)
    """
    tb = idx_ref.shape[0]
    tv = w_ref.shape[0]
    j = pl.program_id(1)

    idx = idx_ref[...]                                          # (TB, S) int32
    # Lane axis = vocab; offset by this chunk's base row.
    vocab = j * tv + lax.broadcasted_iota(jnp.int32, (tb, tv), 1)

    # Accumulate one-hot hits into a count matrix (pure VPU work).  bag_size is
    # small & static -> unrolled python loop keeps everything 2D.  On v6e/v7x
    # count_dtype is bf16 (half the vregs / VALU traffic, no final cast);
    # counts <= bag_size so bf16 is exact.
    counts = jnp.zeros((tb, tv), count_dtype)
    for s in range(bag_size):
        counts = counts + (idx[:, s:s + 1] == vocab).astype(count_dtype)
    counts_mxu = counts if counts.dtype == w_ref.dtype else counts.astype(w_ref.dtype)

    # Single MXU matmul per chunk, f32 accumulation.
    partial = jnp.dot(counts_mxu, w_ref[...], preferred_element_type=jnp.float32)

    if not multi_chunk:
        out_ref[...] = partial.astype(out_ref.dtype)
    else:
        @pl.when(j == 0)
        def _():
            acc_ref[...] = jnp.zeros_like(acc_ref)

        acc_ref[...] += partial

        @pl.when(j == pl.num_programs(1) - 1)
        def _():
            out_ref[...] = acc_ref[...].astype(out_ref.dtype)


def embedding_bag_sum(indices: jax.Array, weight: jax.Array, *,
                      mxu_dtype=jnp.bfloat16, out_dtype=jnp.bfloat16,
                      bag_tile: int = 256) -> jax.Array:
    """Pallas EmbeddingBag(mode='sum'). indices: (B, S) int, weight: (V, H).

    Out-of-range indices (>= V) hit zero-padded rows and contribute 0
    (PyTorch would raise); padded bag rows are sliced off before returning.
    Set mxu_dtype=jnp.float32 for an exact-parity (non-quantized) path.
    """
    B, S = indices.shape
    V, H = weight.shape

    kind = _device_kind()
    pre_v6 = _is_pre_v6(kind)
    multi_core = _is_multi_core(kind)

    w_dtype = jnp.dtype(mxu_dtype)
    if w_dtype == jnp.dtype(jnp.bfloat16):
        # bf16 MXU operand can only hold exact counts up to 256.
        assert S <= 256, "bag_size > 256 needs mxu_dtype=jnp.float32 for exact counts"
        count_dtype = jnp.int32 if pre_v6 else jnp.bfloat16
    else:
        count_dtype = w_dtype

    TV, V_pad, H_pad = _vocab_plan(V, H)
    n_vchunks = V_pad // TV

    B8 = _round_up(max(B, 1), 8)
    if multi_core and B8 >= 16:
        # Ensure >= 2 bag tiles so the "parallel" axis can split across the
        # two v7x TensorCores.
        TB = min(bag_tile, _round_up((B8 + 1) // 2, 8))
    else:
        TB = min(bag_tile, B8)
    B_pad = _round_up(B8, TB)

    w = weight.astype(w_dtype)
    if (V_pad, H_pad) != (V, H):              # no-op for pre-padded tables
        w = jnp.pad(w, ((0, V_pad - V), (0, H_pad - H)))
    idx = indices.astype(jnp.int32)
    if B_pad != B:
        idx = jnp.pad(idx, ((0, B_pad - B), (0, 0)))   # padded bags -> row 0, sliced off

    # Generation-aware VMEM budget.
    cap = _vmem_capacity_bytes()
    w_item = jnp.dtype(w_dtype).itemsize
    out_item = jnp.dtype(out_dtype).itemsize
    n_tbl_bufs = 1 if n_vchunks == 1 else 2
    est_bytes = (n_tbl_bufs * TV * H_pad * w_item        # table buffers
                 + 2 * TB * S * 4                        # idx double buffer
                 + 2 * TB * H_pad * out_item             # out double buffer
                 + TB * H_pad * 4                        # f32 accumulator
                 + 4 * TB * TV * 4)                      # iota/compare/count temps
    vmem_limit = int(min(max(2 * est_bytes, 32 * 1024 * 1024), int(0.8 * cap)))

    kernel = functools.partial(_embedding_bag_sum_kernel, bag_size=S,
                               count_dtype=count_dtype,
                               multi_chunk=(n_vchunks > 1))

    if n_vchunks == 1:
        # Constant block index -> never re-fetched; single buffer halves VMEM.
        table_spec = pl.BlockSpec((TV, H_pad), lambda i, j: (j, 0),
                                  pipeline_mode=pl.Buffered(1))
    else:
        table_spec = pl.BlockSpec((TV, H_pad), lambda i, j: (j, 0))

    out = pl.pallas_call(
        kernel,
        out_shape=jax.ShapeDtypeStruct((B_pad, H_pad), out_dtype),
        grid_spec=pltpu.PrefetchScalarGridSpec(
            num_scalar_prefetch=0,
            grid=(B_pad // TB, n_vchunks),
            in_specs=[
                pl.BlockSpec((TB, S), lambda i, j: (i, 0)),     # bag tile
                table_spec,                                     # vocab chunk
            ],
            out_specs=pl.BlockSpec((TB, H_pad), lambda i, j: (i, 0)),
            scratch_shapes=[pltpu.VMEM((TB, H_pad), jnp.float32)],
        ),
        compiler_params=pltpu.CompilerParams(
            dimension_semantics=("parallel", "arbitrary"),
            vmem_limit_bytes=vmem_limit,
        ),
    )(idx, w)

    if B_pad != B or H_pad != H:
        out = out[:B, :H]
    return out


class Graph:
    """Minimal stand-in for mol_gnn's Graph container (only V and E used)."""

    def __init__(self, V, E):
        self.V = V
        self.E = E


class GraphEmbedding:
    """JAX/Pallas port of mol_gnn.nn.gnn.embed.GraphEmbedding.

    Node and edge lookups are two independent pallas_calls against tables that
    are quantized (bf16 by default; opt out with mxu_dtype=jnp.float32) and
    zero-padded ONCE at construction time, so no per-call pad/concat traffic.
    """

    def __init__(self, num_node_types: int, num_edge_types: int,
                 hidden_dim: int = 256, *, key=None,
                 mxu_dtype=jnp.bfloat16, out_dtype=jnp.bfloat16):
        if key is None:
            key = jax.random.PRNGKey(0)
        k_node, k_edge = jax.random.split(key)
        # nn.EmbeddingBag default init: N(0, 1)  (f32 master copies kept)
        self.node_weight = jax.random.normal(
            k_node, (num_node_types, hidden_dim), jnp.float32)
        self.edge_weight = jax.random.normal(
            k_edge, (num_edge_types, hidden_dim), jnp.float32)
        self.hidden_dim = hidden_dim
        self.mxu_dtype = mxu_dtype
        self.out_dtype = out_dtype
        self._node_table = _pad_table(self.node_weight, mxu_dtype)
        self._edge_table = _pad_table(self.edge_weight, mxu_dtype)

    def __call__(self, G: Graph) -> Graph:
        out_v = embedding_bag_sum(G.V, self._node_table,
                                  mxu_dtype=self.mxu_dtype,
                                  out_dtype=self.out_dtype)
        out_e = embedding_bag_sum(G.E, self._edge_table,
                                  mxu_dtype=self.mxu_dtype,
                                  out_dtype=self.out_dtype)
        H = self.hidden_dim
        if out_v.shape[1] != H:
            out_v = out_v[:, :H]
        if out_e.shape[1] != H:
            out_e = out_e[:, :H]
        return Graph(out_v, out_e)

    @property
    def num_node_types(self) -> int:
        return self.node_weight.shape[0]

    @property
    def num_edge_types(self) -> int:
        return self.edge_weight.shape[0]


def _reference_embedding_bag_sum(indices, weight):
    return jnp.take(weight, indices, axis=0).sum(axis=1)


if __name__ == "__main__":
    num_node_types = 16
    num_edge_types = 24
    hidden_dim = 128   # multiple of 128 -> lane-dense output, no trailing slice
    num_nodes = 8      # number of node "bags"
    num_edges = 16     # number of edge "bags"
    bag_size = 4       # features per node / edge

    key = jax.random.PRNGKey(0)
    k_model, k_v, k_e = jax.random.split(key, 3)

    model = GraphEmbedding(num_node_types, num_edge_types, hidden_dim,
                           key=k_model)

    V_idx = jax.random.randint(k_v, (num_nodes, bag_size), 0, num_node_types,
                               dtype=jnp.int32)
    E_idx = jax.random.randint(k_e, (num_edges, bag_size), 0, num_edge_types,
                               dtype=jnp.int32)
    G = Graph(V_idx, E_idx)

    out = model(G)
    jax.block_until_ready(out.V)
    jax.block_until_ready(out.E)

    assert out.V.shape == (num_nodes, hidden_dim)
    assert out.E.shape == (num_edges, hidden_dim)

    outV = out.V.astype(jnp.float32)
    outE = out.E.astype(jnp.float32)

    # Check against the bf16-quantized tables the kernel actually uses
    # (accumulation is f32; output is bf16, so allow ~1 bf16 ulp).
    wq_node = model.node_weight.astype(jnp.bfloat16).astype(jnp.float32)
    wq_edge = model.edge_weight.astype(jnp.bfloat16).astype(jnp.float32)
    ref_Vq = _reference_embedding_bag_sum(V_idx, wq_node)
    ref_Eq = _reference_embedding_bag_sum(E_idx, wq_edge)
    assert jnp.allclose(outV, ref_Vq, atol=5e-2), "node bag-sum mismatch (quantized ref)"
    assert jnp.allclose(outE, ref_Eq, atol=5e-2), "edge bag-sum mismatch (quantized ref)"

    # Loose check against the full-precision f32 reference (bf16 table +
    # bf16 output each contribute ~2^-9 relative error).
    ref_V = _reference_embedding_bag_sum(V_idx, model.node_weight)
    ref_E = _reference_embedding_bag_sum(E_idx, model.edge_weight)
    assert jnp.allclose(outV, ref_V, atol=1.5e-1), "node bag-sum mismatch (f32 ref)"
    assert jnp.allclose(outE, ref_E, atol=1.5e-1), "edge bag-sum mismatch (f32 ref)"

    # Secondary check: exercises the vocab-chunked reduction path (multiple
    # vocab grid steps), bag-axis padding and hidden-dim padding/slicing.
    k_w2, k_i2 = jax.random.split(jax.random.PRNGKey(1))
    V2, H2, B2, S2 = 300, 64, 10, 3
    w2 = jax.random.normal(k_w2, (V2, H2), jnp.float32)
    idx2 = jax.random.randint(k_i2, (B2, S2), 0, V2, dtype=jnp.int32)
    out2 = embedding_bag_sum(idx2, w2, out_dtype=jnp.float32)
    jax.block_until_ready(out2)
    assert out2.shape == (B2, H2)
    ref2 = _reference_embedding_bag_sum(
        idx2, w2.astype(jnp.bfloat16).astype(jnp.float32))
    assert jnp.allclose(out2, ref2, atol=1e-3), "chunked bag-sum mismatch"

    print("KERNEL_OK")
</pallas_src>

<mosaic_0001>
module attributes {stable_mosaic.version = 11 : i64} {
  func.func @_embedding_bag_sum_kernel(%arg0: i32, %arg1: i32, %arg2: memref<8x4xi32, #tpu.memory_space<vmem>>, %arg3: memref<128x128xbf16, #tpu.memory_space<vmem>>, %arg4: memref<8x128xbf16, #tpu.memory_space<vmem>>, %arg5: memref<8x128xf32, #tpu.memory_space<vmem>>) attributes {dimension_semantics = [#tpu.dimension_semantics<parallel>, #tpu.dimension_semantics<arbitrary>], iteration_bounds = array<i64: 1, 1>, scalar_prefetch = 0 : i64, scratch_operands = 1 : i64, tpu.core_type = #tpu.core_type<tc>, window_params = [{transform_indices = @transform_0, window_bounds = array<i64: 8, 4>}, {pipeline_mode = #tpu.pipeline_mode<synchronous>, transform_indices = @transform_1, window_bounds = array<i64: 128, 128>}, {transform_indices = @transform_2, window_bounds = array<i64: 8, 128>}]} {
    %c0 = arith.constant 0 : index
    %c0_0 = arith.constant 0 : index
    %0 = vector.load %arg2[%c0, %c0_0] : memref<8x4xi32, #tpu.memory_space<vmem>>, vector<8x4xi32>
    %c128_i32 = arith.constant 128 : i32
    %1 = arith.muli %arg1, %c128_i32 : i32
    %2 = tpu.iota {dimensions = array<i32: 1>} : vector<8x128xi32>
    %3 = vector.broadcast %1 : i32 to vector<8x128xi32>
    %4 = arith.addi %3, %2 : vector<8x128xi32>
    %cst = arith.constant 0.000000e+00 : bf16
    %5 = vector.broadcast %cst : bf16 to vector<8x128xbf16>
    %6 = vector.extract_strided_slice %0 {offsets = [0, 0], sizes = [8, 1], strides = [1, 1]} : vector<8x4xi32> to vector<8x1xi32>
    %7 = vector.broadcast %6 : vector<8x1xi32> to vector<8x128xi32>
    %8 = arith.cmpi eq, %7, %4 : vector<8x128xi32>
    %9 = arith.extui %8 : vector<8x128xi1> to vector<8x128xi32>
    %10 = arith.sitofp %9 : vector<8x128xi32> to vector<8x128xf32>
    %11 = arith.truncf %10 : vector<8x128xf32> to vector<8x128xbf16>
    %12 = arith.addf %5, %11 : vector<8x128xbf16>
    %13 = vector.extract_strided_slice %0 {offsets = [0, 1], sizes = [8, 1], strides = [1, 1]} : vector<8x4xi32> to vector<8x1xi32>
    %14 = vector.broadcast %13 : vector<8x1xi32> to vector<8x128xi32>
    %15 = arith.cmpi eq, %14, %4 : vector<8x128xi32>
    %16 = arith.extui %15 : vector<8x128xi1> to vector<8x128xi32>
    %17 = arith.sitofp %16 : vector<8x128xi32> to vector<8x128xf32>
    %18 = arith.truncf %17 : vector<8x128xf32> to vector<8x128xbf16>
    %19 = arith.addf %12, %18 : vector<8x128xbf16>
    %20 = vector.extract_strided_slice %0 {offsets = [0, 2], sizes = [8, 1], strides = [1, 1]} : vector<8x4xi32> to vector<8x1xi32>
    %21 = vector.broadcast %20 : vector<8x1xi32> to vector<8x128xi32>
    %22 = arith.cmpi eq, %21, %4 : vector<8x128xi32>
    %23 = arith.extui %22 : vector<8x128xi1> to vector<8x128xi32>
    %24 = arith.sitofp %23 : vector<8x128xi32> to vector<8x128xf32>
    %25 = arith.truncf %24 : vector<8x128xf32> to vector<8x128xbf16>
    %26 = arith.addf %19, %25 : vector<8x128xbf16>
    %27 = vector.extract_strided_slice %0 {offsets = [0, 3], sizes = [8, 1], strides = [1, 1]} : vector<8x4xi32> to vector<8x1xi32>
    %28 = vector.broadcast %27 : vector<8x1xi32> to vector<8x128xi32>
    %29 = arith.cmpi eq, %28, %4 : vector<8x128xi32>
    %30 = arith.extui %29 : vector<8x128xi1> to vector<8x128xi32>
    %31 = arith.sitofp %30 : vector<8x128xi32> to vector<8x128xf32>
    %32 = arith.truncf %31 : vector<8x128xf32> to vector<8x128xbf16>
    %33 = arith.addf %26, %32 : vector<8x128xbf16>
    %c0_1 = arith.constant 0 : index
    %c0_2 = arith.constant 0 : index
    %34 = vector.load %arg3[%c0_1, %c0_2] : memref<128x128xbf16, #tpu.memory_space<vmem>>, vector<128x128xbf16>
    %cst_3 = arith.constant dense<0.000000e+00> : vector<8x128xf32>
    %35 = tpu.matmul %33, %34, %cst_3 {dimension_numbers = #tpu.dot_dimension_numbers<[1], [0], [0], [1], [0, 0, 1, 1], [], []>} : vector<8x128xbf16>, vector<128x128xbf16>, vector<8x128xf32> -> vector<8x128xf32>
    %36 = arith.truncf %35 : vector<8x128xf32> to vector<8x128xbf16>
    %c0_4 = arith.constant 0 : index
    %c0_5 = arith.constant 0 : index
    %37 = vector.load %arg4[%c0_4, %c0_5] : memref<8x128xbf16, #tpu.memory_space<vmem>>, vector<8x128xbf16>
    tpu.vector_store %arg4[%c0_4, %c0_5], %36 {strides = array<i32>} : memref<8x128xbf16, #tpu.memory_space<vmem>>, vector<8x128xbf16>,
    return
  }
  func.func @transform_0(%arg0: i32, %arg1: i32) -> (i32, i32) {
    %c0_i32 = arith.constant 0 : i32
    %c0_i32_0 = arith.constant 0 : i32
    return %arg0, %c0_i32 : i32, i32
  }
  func.func @transform_1(%arg0: i32, %arg1: i32) -> (i32, i32) {
    %c0_i32 = arith.constant 0 : i32
    %c0_i32_0 = arith.constant 0 : i32
    return %arg1, %c0_i32 : i32, i32
  }
  func.func @transform_2(%arg0: i32, %arg1: i32) -> (i32, i32) {
    %c0_i32 = arith.constant 0 : i32
    %c0_i32_0 = arith.constant 0 : i32
    return %arg0, %c0_i32 : i32, i32
  }
}

</mosaic_0001>

<llo_original>
// kernel: tpu_custom_call.1
$region0: #{tpu_custom_call.1}
  #allocation0 [shape = 'u32[]', space=smem, size = 0x4, offset = 0x4, fixed_abs, tag = 'smem constant byte address 0x4 - core index']
  #allocation1 [shape = 'u32[144,128]{1,0:T(1,128)}', space=vmem, size = 0x12000, scoped, tag = 'internal scratch']
  #allocation2 [shape = 'f32[8,128]{1,0:T(8,128)}', space=vmem, size = 0x1000, scoped, tag = 'scratch operand']
  %s0 = inlined_call_operand.vmem [shape: s32[8,4], index: 0, kind: input, shape index: {}]
  %s1 = inlined_call_operand.hbm [shape: bf16[128,128], index: 1, kind: input, shape index: {}]
  %s2 = inlined_call_operand.hbm [shape: bf16[8,128], index: 2, kind: output, shape index: {}]
  %s3 = sld [smem:[#allocation0]]
  $region22: #{tpu_custom_call.1} parent=0
    _
  %s5 = ssub.s32 1, %s3
  %s6 = scalar_select 0, %s5, %s3
  $region1: #{tpu_custom_call.1} parent=0
    #allocation3 [shape = 'u8[32768]{0}', space=vmem, size = 0x8000, scoped, tag = 'input window, operand 1, single buffered']
    #allocation4 [shape = 's32[1]{0}', space=sflag, size = 0x4, scoped, tag = 'scoped memory for tpu_custom_call.1']
    #allocation5 [shape = 's32[1]{0}', space=sflag, size = 0x4, scoped, tag = 'scoped memory for tpu_custom_call.1']
    #allocation6 [shape = 'u8[2048]{0}', space=vmem, size = 0x800, scoped, tag = 'output window, operand 0, single buffered']
    %7 = vsyncpa [#allocation4], 0
    %8 = vsyncpa [#allocation5], 0
    // Predicated region
    $region2: #{tpu_custom_call.1} parent=1 // pred_check
      _
    $region3: #{tpu_custom_call.1} parent=1 // pred_check_branch
      %10 = sbr.rel (0) target = $region5
    $region4: #{tpu_custom_call.1} parent=1 // pred_region
      _
    $region5: #{tpu_custom_call.1} parent=1 // pred_fallthru
      _
    // Predicated region
    $region6: #{tpu_custom_call.1} parent=1 // pred_check
      _
    $region7: #{tpu_custom_call.1} parent=1 // pred_check_branch
      %12 = sbr.rel (0) target = $region9
    $region8: #{tpu_custom_call.1} parent=1 // pred_region
      %s14 = ssub.s32 1024, 1024
      %15 = vsyncadd [#allocation4], %s14
      %s16 = sshll.u32 [#allocation3], 4
      %s17 = int_to_ptr.vmem [resolvable:$true] %s16
      %22 = dma.hbm_to_vmem [thread:$0]  %s1, 1024, %s17, [#allocation4], 64, 64, 4
    $region9: #{tpu_custom_call.1} parent=1 // pred_fallthru
      _
    // Predicated region
    $region10: #{tpu_custom_call.1} parent=1 // pred_check
      _
    $region11: #{tpu_custom_call.1} parent=1 // pred_check_branch
      %24 = sbr.rel (0) target = $region13
    $region12: #{tpu_custom_call.1} parent=1 // pred_region
      %25 = dma.done [#allocation4], 1024
    $region13: #{tpu_custom_call.1} parent=1 // pred_fallthru
      _
    %v27 = vld [vmem:[%s0] sm:$0xff]
    %s28 = smul.u32 0, 128
    %v29 = vlaneseq
    %v30 = vand.u32 %v29, 127
    %v31 = vstv %s28
    %v32 = vadd.s32 %v31, %v30
    %33 = vset.pattern.permute.xlu0 0
    %34 = vperm.xlu0 %33, %v27
    %v35 = vpop.permute.xlu0 %34
    %vm36 = vcmp.eq.s32.totalorder %v35, %v32
    %v37 = vsel %vm36, 1, 0
    %v38 = vcvt.s32.f32 %v37
    %v39 = vpack.c.bf16 %v38, %v38
    %v40 = vadd.bf16 %v39, 0
    %41 = vset.pattern.permute.xlu0 1
    %42 = vperm.xlu0 %41, %v27
    %v43 = vpop.permute.xlu0 %42
    %vm44 = vcmp.eq.s32.totalorder %v43, %v32
    %v45 = vsel %vm44, 1, 0
    %v46 = vcvt.s32.f32 %v45
    %v47 = vpack.c.bf16 %v46, %v46
    %v48 = vadd.bf16 %v40, %v47
    %49 = vset.pattern.permute.xlu0 2
    %50 = vperm.xlu0 %49, %v27
    %v51 = vpop.permute.xlu0 %50
    %vm52 = vcmp.eq.s32.totalorder %v51, %v32
    %v53 = vsel %vm52, 1, 0
    %v54 = vcvt.s32.f32 %v53
    %v55 = vpack.c.bf16 %v54, %v54
    %v56 = vadd.bf16 %v48, %v55
    %57 = vset.pattern.permute.xlu0 3
    %58 = vperm.xlu0 %57, %v27
    %v59 = vpop.permute.xlu0 %58
    %vm60 = vcmp.eq.s32.totalorder %v59, %v32
    %v61 = vsel %vm60, 1, 0
    %v62 = vcvt.s32.f32 %v61
    %v63 = vpack.c.bf16 %v62, %v62
    %v64 = vadd.bf16 %v56, %v63
    %v65 = vld [vmem:[#allocation3] sm:$0xf]
    %v66 = vld [vmem:[#allocation3 + $0x4] sm:$0xf]
    %v67 = vld [vmem:[#allocation3 + $0x8] sm:$0xf]
    %v68 = vld [vmem:[#allocation3 + $0xc] sm:$0xf]
    %v69 = vld [vmem:[#allocation3 + $0x10] sm:$0xf]
    %v70 = vld [vmem:[#allocation3 + $0x14] sm:$0xf]
    %v71 = vld [vmem:[#allocation3 + $0x18] sm:$0xf]
    %v72 = vld [vmem:[#allocation3 + $0x1c] sm:$0xf]
    %v73 = vld [vmem:[#allocation3 + $0x20] sm:$0xf]
    %v74 = vld [vmem:[#allocation3 + $0x24] sm:$0xf]
    %v75 = vld [vmem:[#allocation3 + $0x28] sm:$0xf]
    %v76 = vld [vmem:[#allocation3 + $0x2c] sm:$0xf]
    %v77 = vld [vmem:[#allocation3 + $0x30] sm:$0xf]
    %v78 = vld [vmem:[#allocation3 + $0x34] sm:$0xf]
    %v79 = vld [vmem:[#allocation3 + $0x38] sm:$0xf]
    %v80 = vld [vmem:[#allocation3 + $0x3c] sm:$0xf]
    %v97 = vunpack.c.l.b16 %v65
    %v98 = vunpack.c.l.b16 %v66
    %v99 = vunpack.c.l.b16 %v67
    %v100 = vunpack.c.l.b16 %v68
    %v101 = vunpack.c.l.b16 %v69
    %v102 = vunpack.c.l.b16 %v70
    %v103 = vunpack.c.l.b16 %v71
    %v104 = vunpack.c.l.b16 %v72
    %v105 = vunpack.c.l.b16 %v73
    %v106 = vunpack.c.l.b16 %v74
    %v107 = vunpack.c.l.b16 %v75
    %v108 = vunpack.c.l.b16 %v76
    %v109 = vunpack.c.l.b16 %v77
    %v110 = vunpack.c.l.b16 %v78
    %v111 = vunpack.c.l.b16 %v79
    %v112 = vunpack.c.l.b16 %v80
    %v113 = vpack.c.b16 %v98, %v97
    %v114 = vpack.c.b16 %v100, %v99
    %v115 = vpack.c.b16 %v102, %v101
    %v116 = vpack.c.b16 %v104, %v103
    %v117 = vpack.c.b16 %v106, %v105
    %v118 = vpack.c.b16 %v108, %v107
    %v119 = vpack.c.b16 %v110, %v109
    %v120 = vpack.c.b16 %v112, %v111
    %129 = vmatprep.subr.bf16.mxu0 0
    %130 = vmatpush1.bf16.msra.mxu0 %v113
    %131 = vmatprep.subr.bf16.mxu0 0
    %132 = vmatpush1.bf16.msra.mxu0 %v114
    %133 = vmatprep.subr.bf16.mxu0 0
    %134 = vmatpush1.bf16.msra.mxu0 %v115
    %135 = vmatprep.subr.bf16.mxu0 0
    %136 = vmatpush1.bf16.msra.mxu0 %v116
    %137 = vmatprep.subr.bf16.mxu0 0
    %138 = vmatpush1.bf16.msra.mxu0 %v117
    %139 = vmatprep.subr.bf16.mxu0 0
    %140 = vmatpush1.bf16.msra.mxu0 %v118
    %141 = vmatprep.subr.bf16.mxu0 0
    %142 = vmatpush1.bf16.msra.mxu0 %v119
    %143 = vmatprep.subr.bf16.mxu0 0
    %144 = vmatpush1.bf16.msra.mxu0 %v120
    %145 = vmatprep.subr.bf16.mxu0 0
    %146 = vmatpush1.bf16.msra.mxu0 0
    %147 = vmatprep.subr.bf16.mxu0 0
    %148 = vmatpush1.bf16.msra.mxu0 0
    %149 = vmatprep.subr.bf16.mxu0 0
    %150 = vmatpush1.bf16.msra.mxu0 0
    %151 = vmatprep.subr.bf16.mxu0 0
    %152 = vmatpush1.bf16.msra.mxu0 0
    %153 = vmatprep.subr.bf16.mxu0 0
    %154 = vmatpush1.bf16.msra.mxu0 0
    %155 = vmatprep.subr.bf16.mxu0 0
    %156 = vmatpush1.bf16.msra.mxu0 0
    %157 = vmatprep.subr.bf16.mxu0 0
    %158 = vmatpush1.bf16.msra.mxu0 0
    %159 = vmatprep.subr.bf16.mxu0 0
    %160 = vmatpush1.bf16.msra.mxu0 0
    %161 = vmatprep.mubr.bf16.mxu0 0
    %162 = vmatmul.mubr.bf16.gmra.mrb[0].mxu0 %v64
    %v163 = vpop.f32.mrb[0].mxu0
    %v164 = vadd.f32 0.0, %v163
    %v165 = vpop.f32.mrb[0].mxu0
    %v166 = vpop.f32.mrb[0].mxu0
    %v167 = vpop.f32.mrb[0].mxu0
    %168 = vdwg.mxu0
    %v169 = vpack.c.bf16 %v164, %v164
    %170 = vst [vmem:[#allocation6] sm:$0xf] %v169
    // Predicated region
    $region14: #{tpu_custom_call.1} parent=1 // pred_check
      _
    $region15: #{tpu_custom_call.1} parent=1 // pred_check_branch
      %172 = sbr.rel (0) target = $region17
    $region16: #{tpu_custom_call.1} parent=1 // pred_region
      %s174 = ssub.s32 64, 64
      %175 = vsyncadd [#allocation5], %s174
      %s177 = sshll.u32 [#allocation6], 4
      %s178 = int_to_ptr.vmem [resolvable:$true] %s177
      %180 = dma.vmem_to_hbm [thread:$0]  %s178, 64, %s2, [#allocation5]
    $region17: #{tpu_custom_call.1} parent=1 // pred_fallthru
      _
    // Predicated region
    $region18: #{tpu_custom_call.1} parent=1 // pred_check
      _
    $region19: #{tpu_custom_call.1} parent=1 // pred_check_branch
      %182 = sbr.rel (0) target = $region21
    $region20: #{tpu_custom_call.1} parent=1 // pred_region
      %183 = dma.done [#allocation5], 64
    $region21: #{tpu_custom_call.1} parent=1 // pred_fallthru
      _
    %184 = vsyncpa [#allocation4], 1
    %185 = vsyncpa [#allocation5], 1

</llo_original>
